<compile_context>
chip_gen: v6e
topology: v6e:2x2x1
jax: 0.10.0
libtpu: 0.0.40
codegen_flags: <defaults>
</compile_context>

<pallas_src>
import jax
import jax.numpy as jnp
from jax.experimental import pallas as pl
from jax.experimental.pallas import tpu as pltpu

LANES = 128
DEFAULT_TILE_ROWS = 4096  # 4096 rows x 128 lanes x 4 B = 2 MiB per buffer


def linear_kernel(w_ref, b_ref, x_ref, o_ref):
    # w_ref, b_ref: (1,) f32 scalars in SMEM; x_ref, o_ref: (tile, 128) in VMEM.
    w = w_ref[0]
    b = b_ref[0]
    # Compute in f32 (matches PyTorch's f32 nn.Linear) then cast to out dtype;
    # both casts are no-ops for f32 inputs.
    y = x_ref[...].astype(jnp.float32) * w + b
    o_ref[...] = y.astype(o_ref.dtype)


def _pick_tile_rows(rows, requested):
    """Choose a tile height (multiple of 8 sublanes)."""
    rows8 = max(8, ((rows + 7) // 8) * 8)
    tile = min(requested, rows8)
    # For large inputs that would otherwise fit in a single tile, split into
    # (at least) two grid steps so the "parallel" row axis can be sharded
    # across v7x's two TensorCores.  Irrelevant for tiny inputs.
    if tile >= rows8 and rows8 * LANES * 4 > (1 << 20):
        half = ((rows + 1) // 2 + 7) // 8 * 8  # ceil(rows/2) rounded up to x8
        tile = min(tile, max(8, half))
    # Block-shape constraint: second-to-last dim multiple of 8.
    tile = max(8, (tile // 8) * 8)
    return tile


def linear_regression_forward(x, weight, bias, tile_rows=DEFAULT_TILE_ROWS):
    """x: (N, 1), weight: (1, 1), bias: (1,) -> (N, 1).  y = x @ w.T + b."""
    n, in_f = x.shape
    out_f, w_in = weight.shape
    assert in_f == 1 and out_f == 1 and w_in == 1, "module is nn.Linear(1, 1)"

    flat = x.reshape(-1)
    total = flat.shape[0]

    # Lane-dense slab.  Fast path: N % 128 == 0 -> pure reshape, zero copies.
    # Otherwise pad only the short tail (<128 elements).
    rem = total % LANES
    padded = rem != 0
    if padded:
        flat = jnp.pad(flat, (0, LANES - rem))
    rows = flat.shape[0] // LANES
    slab = flat.reshape(rows, LANES)

    tile = _pick_tile_rows(rows, tile_rows)
    # Ragged final block (rows not a multiple of tile) is handled by Pallas
    # with masked writes -- no padding of rows to a tile multiple.
    grid = (pl.cdiv(rows, tile),)

    out_slab = pl.pallas_call(
        linear_kernel,
        out_shape=jax.ShapeDtypeStruct((rows, LANES), x.dtype),
        grid=grid,
        in_specs=[
            # weight / bias: f32 scalars in SMEM (no HBM->VMEM tile DMAs).
            pl.BlockSpec(memory_space=pltpu.MemorySpace.SMEM),
            pl.BlockSpec(memory_space=pltpu.MemorySpace.SMEM),
            # data: lane-dense row tiles, auto double-buffered.
            pl.BlockSpec((tile, LANES), lambda i: (i, 0)),
        ],
        out_specs=pl.BlockSpec((tile, LANES), lambda i: (i, 0)),
        compiler_params=pltpu.CompilerParams(
            dimension_semantics=("parallel",),   # shard rows across TCs (v7x)
            vmem_limit_bytes=32 * 1024 * 1024,   # safe on v5e/v6e/v7x
        ),
    )(
        weight.reshape(-1).astype(jnp.float32),
        bias.reshape(-1).astype(jnp.float32),
        slab,
    )

    out = out_slab.reshape(-1)
    if padded:
        # Drop the padded tail (those lanes evaluated to b, not 0).
        out = out[:total]
    return out.reshape(n, out_f)


if __name__ == "__main__":
    key = jax.random.PRNGKey(0)
    kx, kw, kb, kx2 = jax.random.split(key, 4)

    # nn.Linear(1, 1) parameters: weight (1, 1), bias (1,)
    weight = jax.random.uniform(kw, (1, 1), jnp.float32, -1.0, 1.0)
    bias = jax.random.uniform(kb, (1,), jnp.float32, -1.0, 1.0)

    # Small input consistent with the module: batch of 8 scalar samples
    # (exercises the padded-tail path).
    x = jax.random.normal(kx, (8, 1), jnp.float32)
    y = jax.block_until_ready(linear_regression_forward(x, weight, bias))
    y_ref = x @ weight.T + bias
    assert y.shape == (8, 1)
    assert jnp.allclose(y, y_ref, atol=1e-6), "mismatch vs reference (N=8)"

    # Aligned batch (exercises the zero-copy reshape fast path + ragged tile).
    x2 = jax.random.normal(kx2, (256, 1), jnp.float32)
    y2 = jax.block_until_ready(linear_regression_forward(x2, weight, bias))
    y2_ref = x2 @ weight.T + bias
    assert y2.shape == (256, 1)
    assert jnp.allclose(y2, y2_ref, atol=1e-6), "mismatch vs reference (N=256)"

    print("KERNEL_OK")
</pallas_src>

<mosaic_0001>
module attributes {stable_mosaic.version = 11 : i64} {
  func.func @linear_kernel(%arg0: i32, %arg1: memref<1xf32, #tpu.memory_space<smem>>, %arg2: memref<1xf32, #tpu.memory_space<smem>>, %arg3: memref<8x128xf32, #tpu.memory_space<vmem>>, %arg4: memref<8x128xf32, #tpu.memory_space<vmem>>) attributes {dimension_semantics = [#tpu.dimension_semantics<parallel>], iteration_bounds = array<i64: 1>, scalar_prefetch = 0 : i64, scratch_operands = 0 : i64, tpu.core_type = #tpu.core_type<tc>, window_params = [{transform_indices = @transform_0, window_bounds = array<i64: 1>}, {transform_indices = @transform_1, window_bounds = array<i64: 1>}, {transform_indices = @transform_2, window_bounds = array<i64: 8, 128>}, {transform_indices = @transform_3, window_bounds = array<i64: 8, 128>}]} {
    %c0 = arith.constant 0 : index
    %0 = memref.load %arg1[%c0] : memref<1xf32, #tpu.memory_space<smem>>
    %c0_0 = arith.constant 0 : index
    %1 = memref.load %arg2[%c0_0] : memref<1xf32, #tpu.memory_space<smem>>
    %c0_1 = arith.constant 0 : index
    %c0_2 = arith.constant 0 : index
    %2 = vector.load %arg3[%c0_1, %c0_2] : memref<8x128xf32, #tpu.memory_space<vmem>>, vector<8x128xf32>
    %3 = vector.broadcast %0 : f32 to vector<8x128xf32>
    %4 = arith.mulf %2, %3 : vector<8x128xf32>
    %5 = vector.broadcast %1 : f32 to vector<8x128xf32>
    %6 = arith.addf %4, %5 : vector<8x128xf32>
    %c0_3 = arith.constant 0 : index
    %c0_4 = arith.constant 0 : index
    %7 = vector.load %arg4[%c0_3, %c0_4] : memref<8x128xf32, #tpu.memory_space<vmem>>, vector<8x128xf32>
    tpu.vector_store %arg4[%c0_3, %c0_4], %6 {strides = array<i32>} : memref<8x128xf32, #tpu.memory_space<vmem>>, vector<8x128xf32>,
    return
  }
  func.func @transform_0(%arg0: i32) -> i32 {
    %c0_i32 = arith.constant 0 : i32
    %c0_i32_0 = arith.constant 0 : i32
    return %c0_i32 : i32
  }
  func.func @transform_1(%arg0: i32) -> i32 {
    %c0_i32 = arith.constant 0 : i32
    %c0_i32_0 = arith.constant 0 : i32
    return %c0_i32 : i32
  }
  func.func @transform_2(%arg0: i32) -> (i32, i32) {
    %c0_i32 = arith.constant 0 : i32
    %c0_i32_0 = arith.constant 0 : i32
    return %arg0, %c0_i32 : i32, i32
  }
  func.func @transform_3(%arg0: i32) -> (i32, i32) {
    %c0_i32 = arith.constant 0 : i32
    %c0_i32_0 = arith.constant 0 : i32
    return %arg0, %c0_i32 : i32, i32
  }
}

</mosaic_0001>

<llo_original>
// kernel: tpu_custom_call.1
$region0: #{tpu_custom_call.1}
  #allocation0 [shape = 'u32[]', space=smem, size = 0x4, offset = 0x4, fixed_abs, tag = 'smem constant byte address 0x4 - core index']
  #allocation1 [shape = 'u32[144,128]{1,0:T(1,128)}', space=vmem, size = 0x12000, scoped, tag = 'internal scratch']
  #allocation2 [shape = 'f32[1]{0:T(128)S(6)}', space=smem, size = 0x200, scoped, tag = 'scoped memory for tpu_custom_call.1']
  #allocation3 [shape = 'f32[1]{0:T(128)S(6)}', space=smem, size = 0x200, scoped, tag = 'scoped memory for tpu_custom_call.1']
  %s0 = inlined_call_operand.<no memory space> [shape: f32[1], index: 0, kind: input, shape index: {}]
  %s1 = inlined_call_operand.<no memory space> [shape: f32[1], index: 1, kind: input, shape index: {}]
  %s2 = inlined_call_operand.vmem [shape: f32[1,128], index: 2, kind: input, shape index: {}]
  %s3 = inlined_call_operand.hbm [shape: f32[1,128], index: 3, kind: output, shape index: {}]
  %s4 = sld [smem:[#allocation0]]
  $region22: #{tpu_custom_call.1} parent=0
    _
  %s6 = ssub.s32 1, %s4
  %s7 = scalar_select 0, %s6, %s4
  %8 = sst [smem:[#allocation2]] %s0
  %9 = sst [smem:[#allocation3]] %s1
  $region1: #{tpu_custom_call.1} parent=0
    #allocation4 [shape = 'u8[4096]{0}', space=vmem, size = 0x1000, scoped, tag = 'output window, operand 0, single buffered']
    #allocation5 [shape = 's32[1]{0}', space=sflag, size = 0x4, scoped, tag = 'scoped memory for tpu_custom_call.1']
    %10 = vsyncpa [#allocation5], 0
    // Predicated region
    $region2: #{tpu_custom_call.1} parent=1 // pred_check
      _
    $region3: #{tpu_custom_call.1} parent=1 // pred_check_branch
      %12 = sbr.rel (0) target = $region5
    $region4: #{tpu_custom_call.1} parent=1 // pred_region
      _
    $region5: #{tpu_custom_call.1} parent=1 // pred_fallthru
      _
    // Predicated region
    $region6: #{tpu_custom_call.1} parent=1 // pred_check
      _
    $region7: #{tpu_custom_call.1} parent=1 // pred_check_branch
      %14 = sbr.rel (0) target = $region9
    $region8: #{tpu_custom_call.1} parent=1 // pred_region
      _
    $region9: #{tpu_custom_call.1} parent=1 // pred_fallthru
      _
    // Predicated region
    $region10: #{tpu_custom_call.1} parent=1 // pred_check
      _
    $region11: #{tpu_custom_call.1} parent=1 // pred_check_branch
      %16 = sbr.rel (0) target = $region13
    $region12: #{tpu_custom_call.1} parent=1 // pred_region
      _
    $region13: #{tpu_custom_call.1} parent=1 // pred_fallthru
      _
    %s17 = sld [smem:[#allocation2]]
    %s18 = sld [smem:[#allocation3]]
    %v19 = vld [vmem:[%s2] sm:$0xff]
    %v20 = vstv %s17
    %v21 = vmul.f32 %v19, %v20
    %v22 = vstv %s18
    %v23 = vadd.f32 %v21, %v22
    %24 = vst [vmem:[#allocation4] sm:$0xff] %v23
    // Predicated region
    $region14: #{tpu_custom_call.1} parent=1 // pred_check
      _
    $region15: #{tpu_custom_call.1} parent=1 // pred_check_branch
      %26 = sbr.rel (0) target = $region17
    $region16: #{tpu_custom_call.1} parent=1 // pred_region
      %s28 = ssub.s32 128, 16
      %29 = vsyncadd [#allocation5], %s28
      %s30 = sshll.u32 [#allocation4], 4
      %s31 = int_to_ptr.vmem [resolvable:$true] %s30
      %36 = dma.vmem_to_hbm [thread:$0]  %s31, 16, %s3, [#allocation5], 16, 16, 1
    $region17: #{tpu_custom_call.1} parent=1 // pred_fallthru
      _
    // Predicated region
    $region18: #{tpu_custom_call.1} parent=1 // pred_check
      _
    $region19: #{tpu_custom_call.1} parent=1 // pred_check_branch
      %38 = sbr.rel (0) target = $region21
    $region20: #{tpu_custom_call.1} parent=1 // pred_region
      %39 = dma.done [#allocation5], 128
    $region21: #{tpu_custom_call.1} parent=1 // pred_fallthru
      _
    %40 = vsyncpa [#allocation5], 1

</llo_original>
